<compile_context>
chip_gen: v6e
topology: v6e:2x2x1
jax: 0.10.0
libtpu: 0.0.40
codegen_flags: <defaults>
</compile_context>

<pallas_src>
from functools import partial

import jax
import jax.numpy as jnp
from jax.experimental import pallas as pl
from jax.experimental.pallas import tpu as pltpu


# ----------------------------------------------------------------------------
# Fused Pallas kernel (per batch-block)
# ----------------------------------------------------------------------------
def _fused_mist_kernel(q_ref,       # (Bb, Q, d)   f32   padded question features
                       m_ref,       # (Bb, 1, Q)   f32   question mask (from text_len)
                       f_ref,       # (Bb, F, d)   bf16  frame features
                       o_ref,       # (Bb, FN, d)  bf16  OCR features (F*numo flat)
                       wa_ref,      # (1, d)       f32   self_attn weight (Linear(d,1))
                       wp_ref,      # (d, d)       bf16  projection weight (in x out)
                       bp_ref,      # (1, d)       f32   projection bias
                       sc_ref,      # out (Bb, 1, PAD) f32  [frame_scores | ocr_scores | 0]
                       pr_ref):     # out (Bb, Q, d)   f32  projected question features
    Bb, Q, d = q_ref.shape
    F = f_ref.shape[1]
    FN = o_ref.shape[1]
    PAD = sc_ref.shape[2]

    qf = q_ref[...].astype(jnp.float32)                        # (Bb, Q, d)
    w = wa_ref[...].astype(jnp.float32)                        # (1, d)

    # ---- _calculate_self_attn ------------------------------------------------
    # Linear(d,1): its scalar bias shifts every logit equally and cancels in
    # softmax, so it is not needed here.
    logits = jnp.sum(qf * w[None, :, :], axis=-1)              # (Bb, Q)  VPU mul + lane reduce
    m = m_ref[...][:, 0, :]                                    # (Bb, Q)
    mx = jnp.max(logits, axis=-1, keepdims=True)               # (Bb, 1)
    # collapsed softmax -> mask -> renorm (identical up to the 1e-12 eps scaling)
    e = jnp.exp(logits - mx) * m
    denom = jnp.sum(e, axis=-1, keepdims=True) + 1e-12
    p = e * pl.reciprocal(denom, approx=True)                  # (Bb, Q)
    gq = jnp.einsum('bxq,bqd->bxd', p.reshape(Bb, 1, Q), qf,
                    preferred_element_type=jnp.float32)        # (Bb, 1, d)

    # ---- frame L2 norm (f32; tiny floor keeps an all-zero row finite) ---------
    fr = f_ref[...].astype(jnp.float32)                        # (Bb, F, d)
    inv = jax.lax.rsqrt(
        jnp.maximum(jnp.sum(fr * fr, axis=-1, keepdims=True), 1e-24))
    seg = fr * inv                                             # (Bb, F, d)

    # ---- question<->segment and question<->OCR selection scores ---------------
    fs = jnp.einsum('bxd,bfd->bxf', gq, seg,
                    preferred_element_type=jnp.float32)        # (Bb, 1, F)
    osr = jnp.einsum('bxd,bnd->bxn', gq.astype(o_ref.dtype), o_ref[...],
                     preferred_element_type=jnp.float32)       # (Bb, 1, FN)
    parts = [fs, osr]
    if PAD > F + FN:
        parts.append(jnp.zeros((Bb, 1, PAD - F - FN), jnp.float32))
    sc_ref[...] = jnp.concatenate(parts, axis=-1)              # single lane-dense store

    # ---- question projection (fused; bf16 operands, f32 accumulate) -----------
    q2 = q_ref[...].astype(jnp.bfloat16).reshape(Bb * Q, d)
    proj = jnp.dot(q2, wp_ref[...], preferred_element_type=jnp.float32)   # (Bb*Q, d)
    pr_ref[...] = proj.reshape(Bb, Q, d) + bp_ref[...][None, :, :]


# ----------------------------------------------------------------------------
# Pallas wrapper
# ----------------------------------------------------------------------------
def _pick_block_b(bs, max_block=8):
    """Largest divisor of bs <= max_block that still leaves >=2 grid steps
    (so v7x's two TensorCores can split the parallel batch axis)."""
    target = min(max_block, max(1, bs // 2))
    for cand in range(target, 0, -1):
        if bs % cand == 0:
            return cand
    return 1


def fused_scores_and_projection(q_pad, q_mask, frame_feat, ocr_feat,
                                w_attn, w_proj_t, b_proj, *, block_b=None):
    """One fused pallas_call over batch blocks computing:
       global question attention, frame L2 norm, frame/OCR selection scores
       (one 128-padded slab) and the question projection."""
    bs, Q, d = q_pad.shape
    F = frame_feat.shape[1]
    FN = ocr_feat.shape[1]
    PAD = int(pl.cdiv(F + FN, 128)) * 128
    if block_b is None:
        block_b = _pick_block_b(bs)
    assert bs % block_b == 0
    grid = (bs // block_b,)

    # bf16 halves HBM->VMEM DMA bytes for the two big feature streams; all
    # reductions / softmax / L2 norm are done in f32 inside the kernel.
    frame_bf = frame_feat.astype(jnp.bfloat16)
    ocr_bf = ocr_feat.astype(jnp.bfloat16)
    wp_bf = w_proj_t.astype(jnp.bfloat16)

    scores, proj = pl.pallas_call(
        _fused_mist_kernel,
        out_shape=(jax.ShapeDtypeStruct((bs, 1, PAD), jnp.float32),
                   jax.ShapeDtypeStruct((bs, Q, d), jnp.float32)),
        grid=grid,
        in_specs=[
            pl.BlockSpec((block_b, Q, d), lambda b: (b, 0, 0)),   # q (padded)
            pl.BlockSpec((block_b, 1, Q), lambda b: (b, 0, 0)),   # question mask
            pl.BlockSpec((block_b, F, d), lambda b: (b, 0, 0)),   # frames (bf16)
            pl.BlockSpec((block_b, FN, d), lambda b: (b, 0, 0)),  # ocr (bf16)
            pl.BlockSpec((1, d), lambda b: (0, 0)),               # w_attn   (VMEM-resident)
            pl.BlockSpec((d, d), lambda b: (0, 0)),               # w_proj_t (VMEM-resident)
            pl.BlockSpec((1, d), lambda b: (0, 0)),               # b_proj   (VMEM-resident)
        ],
        out_specs=(
            pl.BlockSpec((block_b, 1, PAD), lambda b: (b, 0, 0)), # merged score slab
            pl.BlockSpec((block_b, Q, d), lambda b: (b, 0, 0)),   # projected question
        ),
        compiler_params=pltpu.CompilerParams(
            dimension_semantics=("parallel",),
            # TODO(synk): at production sizes (d=768, F=256, large F*numo) size block_b
            # so 2x(q + frame + ocr + out blocks) stays well under ~48 MiB (v7x has
            # 64 MiB VMEM) and set vmem_limit_bytes explicitly.
        ),
    )(q_pad, q_mask, frame_bf, ocr_bf, w_attn, wp_bf, b_proj)

    frame_scores = scores[:, 0, :F]           # (bs, F)
    ocr_scores = scores[:, 0, F:F + FN]       # (bs, F*numo)
    return frame_scores, ocr_scores, proj


# ----------------------------------------------------------------------------
# Forward (glue in plain JAX around the fused Pallas kernel)
# ----------------------------------------------------------------------------
def mist_videoqa_forward(ocr_feat, ocr_mask, frame_feat, q_feat, text_len, ocr_box,
                         w_attn, b_attn, w_proj_t, b_proj,
                         *, numc, frame_topk, ocr_topk, Q):
    bs, ocr_num, fdim = ocr_feat.shape
    _, frame_num, _ = frame_feat.shape
    numf = frame_num // numc
    numo = ocr_num // (numc * numf)
    L = q_feat.shape[1]

    # pad question features to Q with zeros (as in the reference before ISTA)
    if L < Q:
        q_pad = jnp.concatenate(
            [q_feat, jnp.zeros((bs, Q - L, fdim), q_feat.dtype)], axis=1)
    else:
        q_pad = q_feat[:, :Q, :]

    # _get_mask(text_len, .) extended to Q; padded positions are masked out, which
    # leaves the masked-softmax pooling unchanged.
    q_mask = (jnp.arange(Q, dtype=jnp.int32)[None, :]
              < text_len.astype(jnp.int32)[:, None]).astype(jnp.float32)
    q_mask = q_mask.reshape(bs, 1, Q)

    # b_attn (Linear(d,1) bias) shifts every softmax logit equally -> no effect.
    del b_attn

    frame_scores, ocr_scores_flat, question_proj = fused_scores_and_projection(
        q_pad, q_mask, frame_feat, ocr_feat, w_attn, w_proj_t, b_proj)
    ocr_scores = ocr_scores_flat.reshape(bs, numc * numf, numo)       # (bs, F, numo)

    # ---- ISTA stand-in (selection bookkeeping in plain JAX) --------------------
    # TODO(synk): ISTA / DistilBERT Transformer / CLIP internals are not provided in
    # the reference code; selection scoring + question projection are implemented,
    # the transformer stack is omitted.
    _, frame_idx = jax.lax.top_k(frame_scores, frame_topk)            # (bs, frame_topk)
    ground_frame_mask = jnp.sum(
        jax.nn.one_hot(frame_idx, frame_num, dtype=jnp.float32), axis=1)   # (bs, F)

    sel_idx = jnp.broadcast_to(frame_idx[:, :, None], (bs, frame_topk, numo))
    sel_ocr_scores = jnp.take_along_axis(ocr_scores, sel_idx, axis=1)  # (bs, topk, numo)
    _, ocr_sub_idx = jax.lax.top_k(sel_ocr_scores, ocr_topk)           # (bs, topk, ocr_topk)
    flat_ocr_idx = (frame_idx[:, :, None] * numo + ocr_sub_idx).reshape(bs, -1)
    flat_ocr_idx = jnp.sort(flat_ocr_idx, axis=-1)                     # masked_select ordering
    ground_ocr_mask = jnp.sum(
        jax.nn.one_hot(flat_ocr_idx, ocr_num, dtype=jnp.float32), axis=1)  # (bs, ocr_num)

    # ground OCR boxes (masked_select + view + remask equivalent)
    K = flat_ocr_idx.shape[1]
    idx4 = jnp.broadcast_to(flat_ocr_idx[:, :, None], (bs, K, 4))
    ground_ocr_box = jnp.take_along_axis(ocr_box, idx4, axis=1)        # (bs, K, 4)
    ground_box_mask = jnp.take_along_axis(ocr_mask, flat_ocr_idx, axis=1)  # (bs, K)
    ground_ocr_box = ground_ocr_box * ground_box_mask[:, :, None]

    return {
        'ground_frame': frame_idx,
        'ground_bbox': ground_ocr_box,
        'frame_topk': jnp.array(frame_topk, jnp.int32),
        'ocr_topk': jnp.array(ocr_topk, jnp.int32),
        'obj_mmt_in': frame_feat,
        'obj_mask': ground_frame_mask,
        'ocr_mmt_in': ocr_feat,
        'ocr_mask': ground_ocr_mask,
        'txt_emb': question_proj,
    }


# ----------------------------------------------------------------------------
# Main
# ----------------------------------------------------------------------------
if __name__ == "__main__":
    key = jax.random.PRNGKey(0)
    keys = jax.random.split(key, 8)

    bs = 4            # 4 samples -> block_b=2, grid=(2,) exercises batch blocking
    d = 32            # d_model == config.hidden_size (scaled down from 768)
    Q = 8             # max question tokens (scaled down from 20)
    L = 6             # actual text length dimension (< Q to exercise padding path)
    numc = 4
    numf = 4
    nframes = numc * numf          # 16
    numo = 2
    ocr_num = nframes * numo       # 32
    frame_topk = 2
    ocr_topk = 1

    ocr_feat = jax.random.normal(keys[0], (bs, ocr_num, d), jnp.float32)
    frame_feat = jax.random.normal(keys[1], (bs, nframes, d), jnp.float32)
    q_feat = jax.random.normal(keys[2], (bs, L, d), jnp.float32)
    ocr_box = jax.random.uniform(keys[3], (bs, ocr_num, 4), jnp.float32)
    ocr_mask = (jax.random.uniform(keys[4], (bs, ocr_num)) > 0.2).astype(jnp.float32)
    text_len = jnp.array([6, 4, 5, 3], jnp.int32)

    # deterministic parameters: normal(0, initializer_range=0.02), biases zero
    w_attn = 0.02 * jax.random.normal(keys[5], (1, d), jnp.float32)   # self_attn Linear(d,1)
    b_attn = jnp.zeros((1, 1), jnp.float32)
    w_proj_t = 0.02 * jax.random.normal(keys[6], (d, d), jnp.float32)  # projection (in x out)
    b_proj = jnp.zeros((1, d), jnp.float32)

    fwd = jax.jit(partial(mist_videoqa_forward,
                          numc=numc, frame_topk=frame_topk,
                          ocr_topk=ocr_topk, Q=Q))
    out = fwd(ocr_feat, ocr_mask, frame_feat, q_feat, text_len, ocr_box,
              w_attn, b_attn, w_proj_t, b_proj)
    jax.tree_util.tree_map(lambda x: x.block_until_ready(), out)

    # light sanity checks
    assert out['txt_emb'].shape == (bs, Q, d)
    assert out['ground_bbox'].shape == (bs, frame_topk * ocr_topk, 4)
    assert out['obj_mask'].shape == (bs, nframes)
    assert out['ocr_mask'].shape == (bs, ocr_num)
    assert bool(jnp.all(jnp.isfinite(out['txt_emb'])))
    assert bool(jnp.all(jnp.isfinite(out['ground_bbox'])))

    print("KERNEL_OK")
</pallas_src>

<mosaic_0001>
module attributes {stable_mosaic.version = 11 : i64} {
  func.func @_fused_mist_kernel(%arg0: i32, %arg1: memref<2x8x32xf32, #tpu.memory_space<vmem>>, %arg2: memref<2x1x8xf32, #tpu.memory_space<vmem>>, %arg3: memref<2x16x32xbf16, #tpu.memory_space<vmem>>, %arg4: memref<2x32x32xbf16, #tpu.memory_space<vmem>>, %arg5: memref<1x32xf32, #tpu.memory_space<vmem>>, %arg6: memref<32x32xbf16, #tpu.memory_space<vmem>>, %arg7: memref<1x32xf32, #tpu.memory_space<vmem>>, %arg8: memref<2x1x128xf32, #tpu.memory_space<vmem>>, %arg9: memref<2x8x32xf32, #tpu.memory_space<vmem>>) attributes {dimension_semantics = [#tpu.dimension_semantics<parallel>], iteration_bounds = array<i64: 2>, scalar_prefetch = 0 : i64, scratch_operands = 0 : i64, tpu.core_type = #tpu.core_type<tc>, window_params = [{transform_indices = @transform_0, window_bounds = array<i64: 2, 8, 32>}, {transform_indices = @transform_1, window_bounds = array<i64: 2, 1, 8>}, {transform_indices = @transform_2, window_bounds = array<i64: 2, 16, 32>}, {transform_indices = @transform_3, window_bounds = array<i64: 2, 32, 32>}, {pipeline_mode = #tpu.pipeline_mode<synchronous>, transform_indices = @transform_4, window_bounds = array<i64: 1, 32>}, {pipeline_mode = #tpu.pipeline_mode<synchronous>, transform_indices = @transform_5, window_bounds = array<i64: 32, 32>}, {pipeline_mode = #tpu.pipeline_mode<synchronous>, transform_indices = @transform_6, window_bounds = array<i64: 1, 32>}, {transform_indices = @transform_7, window_bounds = array<i64: 2, 1, 128>}, {transform_indices = @transform_8, window_bounds = array<i64: 2, 8, 32>}]} {
    %c0 = arith.constant 0 : index
    %c0_0 = arith.constant 0 : index
    %c0_1 = arith.constant 0 : index
    %0 = vector.load %arg1[%c0, %c0_0, %c0_1] : memref<2x8x32xf32, #tpu.memory_space<vmem>>, vector<2x8x32xf32>
    %c0_2 = arith.constant 0 : index
    %c0_3 = arith.constant 0 : index
    %1 = vector.load %arg5[%c0_2, %c0_3] : memref<1x32xf32, #tpu.memory_space<vmem>>, vector<1x32xf32>
    %2 = vector.shape_cast %1 : vector<1x32xf32> to vector<1x1x32xf32>
    %3 = vector.broadcast %2 : vector<1x1x32xf32> to vector<2x8x32xf32>
    %4 = arith.mulf %0, %3 : vector<2x8x32xf32>
    %cst = arith.constant dense<0.000000e+00> : vector<2x8xf32>
    %5 = vector.multi_reduction <add>, %4, %cst [2] : vector<2x8x32xf32> to vector<2x8xf32>
    %c0_4 = arith.constant 0 : index
    %c0_5 = arith.constant 0 : index
    %c0_6 = arith.constant 0 : index
    %6 = vector.load %arg2[%c0_4, %c0_5, %c0_6] : memref<2x1x8xf32, #tpu.memory_space<vmem>>, vector<2x1x8xf32>
    %7 = vector.shape_cast %6 : vector<2x1x8xf32> to vector<2x8xf32>
    %cst_7 = arith.constant dense<0xFF800000> : vector<2xf32>
    %8 = vector.multi_reduction <maximumf>, %5, %cst_7 [1] : vector<2x8xf32> to vector<2xf32>
    %9 = vector.shape_cast %8 : vector<2xf32> to vector<2x1xf32>
    %10 = vector.broadcast %9 : vector<2x1xf32> to vector<2x8xf32>
    %11 = arith.subf %5, %10 : vector<2x8xf32>
    %12 = math.exp %11 : vector<2x8xf32>
    %13 = arith.mulf %12, %7 : vector<2x8xf32>
    %cst_8 = arith.constant dense<0.000000e+00> : vector<2xf32>
    %14 = vector.multi_reduction <add>, %13, %cst_8 [1] : vector<2x8xf32> to vector<2xf32>
    %15 = vector.shape_cast %14 : vector<2xf32> to vector<2x1xf32>
    %cst_9 = arith.constant 9.99999996E-13 : f32
    %16 = vector.broadcast %cst_9 : f32 to vector<2x1xf32>
    %17 = arith.addf %15, %16 : vector<2x1xf32>
    %18 = tpu.reciprocal %17 {approx = true} : vector<2x1xf32> -> vector<2x1xf32>
    %19 = vector.broadcast %18 : vector<2x1xf32> to vector<2x8xf32>
    %20 = arith.mulf %13, %19 : vector<2x8xf32>
    %21 = vector.shape_cast %20 : vector<2x8xf32> to vector<2x1x8xf32>
    "tpu.trace_start"() <{level = 10 : i32, message = "bxq,bqd->bxd"}> : () -> ()
    %cst_10 = arith.constant dense<0.000000e+00> : vector<2x1x32xf32>
    %22 = tpu.matmul %21, %0, %cst_10 {dimension_numbers = #tpu.dot_dimension_numbers<[2], [1], [1], [2], [0, 0, 0, 1, 1, 2], [0], [0]>} : vector<2x1x8xf32>, vector<2x8x32xf32>, vector<2x1x32xf32> -> vector<2x1x32xf32>
    "tpu.trace_stop"() : () -> ()
    %c0_11 = arith.constant 0 : index
    %c0_12 = arith.constant 0 : index
    %c0_13 = arith.constant 0 : index
    %23 = vector.load %arg3[%c0_11, %c0_12, %c0_13] : memref<2x16x32xbf16, #tpu.memory_space<vmem>>, vector<2x16x32xbf16>
    %24 = arith.extf %23 : vector<2x16x32xbf16> to vector<2x16x32xf32>
    %25 = arith.mulf %24, %24 : vector<2x16x32xf32>
    %cst_14 = arith.constant dense<0.000000e+00> : vector<2x16xf32>
    %26 = vector.multi_reduction <add>, %25, %cst_14 [2] : vector<2x16x32xf32> to vector<2x16xf32>
    %27 = vector.shape_cast %26 : vector<2x16xf32> to vector<2x16x1xf32>
    %cst_15 = arith.constant 1.000000e-24 : f32
    %28 = vector.broadcast %cst_15 : f32 to vector<2x16x1xf32>
    %29 = arith.maximumf %27, %28 : vector<2x16x1xf32>
    %30 = math.rsqrt %29 : vector<2x16x1xf32>
    %31 = vector.broadcast %30 : vector<2x16x1xf32> to vector<2x16x32xf32>
    %32 = arith.mulf %24, %31 : vector<2x16x32xf32>
    "tpu.trace_start"() <{level = 10 : i32, message = "bxd,bfd->bxf"}> : () -> ()
    %cst_16 = arith.constant dense<0.000000e+00> : vector<2x1x16xf32>
    %33 = tpu.matmul %22, %32, %cst_16 {dimension_numbers = #tpu.dot_dimension_numbers<[2], [2], [1], [1], [0, 0, 0, 1, 1, 1], [0], [0]>} : vector<2x1x32xf32>, vector<2x16x32xf32>, vector<2x1x16xf32> -> vector<2x1x16xf32>
    "tpu.trace_stop"() : () -> ()
    %34 = arith.truncf %22 : vector<2x1x32xf32> to vector<2x1x32xbf16>
    %c0_17 = arith.constant 0 : index
    %c0_18 = arith.constant 0 : index
    %c0_19 = arith.constant 0 : index
    %35 = vector.load %arg4[%c0_17, %c0_18, %c0_19] : memref<2x32x32xbf16, #tpu.memory_space<vmem>>, vector<2x32x32xbf16>
    "tpu.trace_start"() <{level = 10 : i32, message = "bxd,bnd->bxn"}> : () -> ()
    %cst_20 = arith.constant dense<0.000000e+00> : vector<2x1x32xf32>
    %36 = tpu.matmul %34, %35, %cst_20 {dimension_numbers = #tpu.dot_dimension_numbers<[2], [2], [1], [1], [0, 0, 0, 1, 1, 1], [0], [0]>} : vector<2x1x32xbf16>, vector<2x32x32xbf16>, vector<2x1x32xf32> -> vector<2x1x32xf32>
    %cst_21 = arith.constant 0.000000e+00 : f32
    "tpu.trace_stop"() : () -> ()
    %37 = vector.broadcast %cst_21 : f32 to vector<2x1x80xf32>
    %38 = tpu.concatenate %33, %36, %37 in 2 : vector<2x1x16xf32>, vector<2x1x32xf32>, vector<2x1x80xf32> -> vector<2x1x128xf32>
    %c0_22 = arith.constant 0 : index
    %c0_23 = arith.constant 0 : index
    %c0_24 = arith.constant 0 : index
    %39 = vector.load %arg8[%c0_22, %c0_23, %c0_24] : memref<2x1x128xf32, #tpu.memory_space<vmem>>, vector<2x1x128xf32>
    tpu.vector_store %arg8[%c0_22, %c0_23, %c0_24], %38 {strides = array<i32>} : memref<2x1x128xf32, #tpu.memory_space<vmem>>, vector<2x1x128xf32>,
    %c0_25 = arith.constant 0 : index
    %c0_26 = arith.constant 0 : index
    %c0_27 = arith.constant 0 : index
    %40 = vector.load %arg1[%c0_25, %c0_26, %c0_27] : memref<2x8x32xf32, #tpu.memory_space<vmem>>, vector<2x8x32xf32>
    %41 = arith.truncf %40 : vector<2x8x32xf32> to vector<2x8x32xbf16>
    %42 = vector.shape_cast %41 : vector<2x8x32xbf16> to vector<16x32xbf16>
    %c0_28 = arith.constant 0 : index
    %c0_29 = arith.constant 0 : index
    %43 = vector.load %arg6[%c0_28, %c0_29] : memref<32x32xbf16, #tpu.memory_space<vmem>>, vector<32x32xbf16>
    %cst_30 = arith.constant dense<0.000000e+00> : vector<16x32xf32>
    %44 = tpu.matmul %42, %43, %cst_30 {dimension_numbers = #tpu.dot_dimension_numbers<[1], [0], [0], [1], [0, 0, 1, 1], [], []>} : vector<16x32xbf16>, vector<32x32xbf16>, vector<16x32xf32> -> vector<16x32xf32>
    %45 = vector.shape_cast %44 : vector<16x32xf32> to vector<2x8x32xf32>
    %c0_31 = arith.constant 0 : index
    %c0_32 = arith.constant 0 : index
    %46 = vector.load %arg7[%c0_31, %c0_32] : memref<1x32xf32, #tpu.memory_space<vmem>>, vector<1x32xf32>
    %47 = vector.shape_cast %46 : vector<1x32xf32> to vector<1x1x32xf32>
    %48 = vector.broadcast %47 : vector<1x1x32xf32> to vector<2x8x32xf32>
    %49 = arith.addf %45, %48 : vector<2x8x32xf32>
    %c0_33 = arith.constant 0 : index
    %c0_34 = arith.constant 0 : index
    %c0_35 = arith.constant 0 : index
    %50 = vector.load %arg9[%c0_33, %c0_34, %c0_35] : memref<2x8x32xf32, #tpu.memory_space<vmem>>, vector<2x8x32xf32>
    tpu.vector_store %arg9[%c0_33, %c0_34, %c0_35], %49 {strides = array<i32>} : memref<2x8x32xf32, #tpu.memory_space<vmem>>, vector<2x8x32xf32>,
    return
  }
  func.func @transform_0(%arg0: i32) -> (i32, i32, i32) {
    %c0_i32 = arith.constant 0 : i32
    %c0_i32_0 = arith.constant 0 : i32
    %c0_i32_1 = arith.constant 0 : i32
    return %arg0, %c0_i32, %c0_i32_0 : i32, i32, i32
  }
  func.func @transform_1(%arg0: i32) -> (i32, i32, i32) {
    %c0_i32 = arith.constant 0 : i32
    %c0_i32_0 = arith.constant 0 : i32
    %c0_i32_1 = arith.constant 0 : i32
    return %arg0, %c0_i32, %c0_i32_0 : i32, i32, i32
  }
  func.func @transform_2(%arg0: i32) -> (i32, i32, i32) {
    %c0_i32 = arith.constant 0 : i32
    %c0_i32_0 = arith.constant 0 : i32
    %c0_i32_1 = arith.constant 0 : i32
    return %arg0, %c0_i32, %c0_i32_0 : i32, i32, i32
  }
  func.func @transform_3(%arg0: i32) -> (i32, i32, i32) {
    %c0_i32 = arith.constant 0 : i32
    %c0_i32_0 = arith.constant 0 : i32
    %c0_i32_1 = arith.constant 0 : i32
    return %arg0, %c0_i32, %c0_i32_0 : i32, i32, i32
  }
  func.func @transform_4(%arg0: i32) -> (i32, i32) {
    %c0_i32 = arith.constant 0 : i32
    %c0_i32_0 = arith.constant 0 : i32
    %c0_i32_1 = arith.constant 0 : i32
    return %c0_i32, %c0_i32_0 : i32, i32
  }
  func.func @transform_5(%arg0: i32) -> (i32, i32) {
    %c0_i32 = arith.constant 0 : i32
    %c0_i32_0 = arith.constant 0 : i32
    %c0_i32_1 = arith.constant 0 : i32
    return %c0_i32, %c0_i32_0 : i32, i32
  }
  func.func @transform_6(%arg0: i32) -> (i32, i32) {
    %c0_i32 = arith.constant 0 : i32
    %c0_i32_0 = arith.constant 0 : i32
    %c0_i32_1 = arith.constant 0 : i32
    return %c0_i32, %c0_i32_0 : i32, i32
  }
  func.func @transform_7(%arg0: i32) -> (i32, i32, i32) {
    %c0_i32 = arith.constant 0 : i32
    %c0_i32_0 = arith.constant 0 : i32
    %c0_i32_1 = arith.constant 0 : i32
    return %arg0, %c0_i32, %c0_i32_0 : i32, i32, i32
  }
  func.func @transform_8(%arg0: i32) -> (i32, i32, i32) {
    %c0_i32 = arith.constant 0 : i32
    %c0_i32_0 = arith.constant 0 : i32
    %c0_i32_1 = arith.constant 0 : i32
    return %arg0, %c0_i32, %c0_i32_0 : i32, i32, i32
  }
}

</mosaic_0001>

<llo_original>
// kernel: mist_videoqa_forward.1
$region0: #{mist_videoqa_forward.1}
  #allocation0 [shape = 'u32[]', space=smem, size = 0x4, offset = 0x4, fixed_abs, tag = 'smem constant byte address 0x4 - core index']
  #allocation1 [shape = 'u32[144,128]{1,0:T(1,128)}', space=vmem, size = 0x12000, scoped, tag = 'internal scratch']
  %s0 = inlined_call_operand.vmem [shape: f32[4,8,32], index: 0, kind: input, shape index: {}]
  %s1 = inlined_call_operand.vmem [shape: f32[4,1,8], index: 1, kind: input, shape index: {}]
  %s2 = inlined_call_operand.vmem [shape: bf16[4,16,32], index: 2, kind: input, shape index: {}]
  %s3 = inlined_call_operand.vmem [shape: bf16[4,32,32], index: 3, kind: input, shape index: {}]
  %s4 = inlined_call_operand.vmem [shape: f32[1,32], index: 4, kind: input, shape index: {}]
  %s5 = inlined_call_operand.vmem [shape: bf16[32,32], index: 5, kind: input, shape index: {}]
  %s6 = inlined_call_operand.vmem [shape: f32[1,32], index: 6, kind: input, shape index: {}]
  %s7 = inlined_call_operand.vmem [shape: f32[4,1,128], index: 7, kind: output, shape index: {0}]
  %s8 = inlined_call_operand.hbm [shape: f32[4,8,32], index: 8, kind: output, shape index: {1}]
  %9 = xla_tuple %s7, %s8
  %s10 = sld [smem:[#allocation0]]
  $region69: #{mist_videoqa_forward.1} parent=0
    _
  %s12 = ssub.s32 1, %s10
  %s13 = scalar_select 0, %s12, %s10
  $region1: #{mist_videoqa_forward.1} parent=0
    #allocation2 [shape = 'u8[16384]{0}', space=vmem, size = 0x4000, scoped, tag = 'output window, operand 1']
    #allocation3 [shape = 's32[2]{0}', space=sflag, size = 0x8, scoped, tag = 'scoped memory for mist_videoqa_forward.1']
    %14 = vsyncpa [#allocation3], 0
    %s15 = scalar_lea.sflag [#allocation3], 1
    %16 = vsyncpa %s15, 0
    loop: start=0, step=1, limit=4
    $region2: #{mist_videoqa_forward.1} parent=1 // loop_pre_header
      _
    $region3: #{mist_videoqa_forward.1} parent=1 // loop_header
      %s18 = sphi 0, %s22
      %p19 = scmp.ge.s32.totalorder %s18, 4
      %s28 = sphi 0, %s30
      %s31 = sphi 0, %s28
      %s32 = sphi 0, %s31
      %s48 = sphi 0, %s32
      %s54 = sphi 0, %s56
      %s57 = sphi 0, %s54
      %s58 = sphi 0, %s57
      %s74 = sphi 0, %s58
      %s80 = sphi 0, %s82
      %s83 = sphi 0, %s80
      %s84 = sphi 0, %s83
      %s100 = sphi 0, %s84
      %s106 = sphi 0, %s108
      %s109 = sphi 0, %s106
      %s110 = sphi 0, %s109
      %s126 = sphi 0, %s110
      %s130 = sphi 0, %s130
      %s132 = sphi 0, %s130
      %s133 = sphi 0, %s132
      %s147 = sphi 0, %s133
      %s151 = sphi 0, %s151
      %s153 = sphi 0, %s151
      %s154 = sphi 0, %s153
      %s168 = sphi 0, %s154
      %s172 = sphi 0, %s172
      %s174 = sphi 0, %s172
      %s175 = sphi 0, %s174
      %s189 = sphi 0, %s175
      %s195 = sphi 0, %s197
      %s198 = sphi 0, %s195
      %s199 = sphi 0, %s198
      %s215 = sphi 0, %s199
      %s221 = sphi 0, %s223
      %s224 = sphi 0, %s221
      %s225 = sphi 0, %s224
      %s241 = sphi 0, %s225
    $region4: #{mist_videoqa_forward.1} parent=1 // loop_header_branch
      %21 = sbr.rel (%p19) target = $region8
    $region5: #{mist_videoqa_forward.1} parent=1 // loop_body
      %s23 = ssub.s32 %s18, 1
      %s24 = ssub.s32 %s18, 2
      %s25 = sadd.s32 %s18, 1
      %s26 = ssub.s32 %s18, %s25
      %p27 = scmp.eq.s32.totalorder %s26, 0
      %s29 = sadd.s32 %s28, 1
      %s30 = scalar_select %p27, %s28, %s29
      %p33 = pneg %p27
      %p34 = scmp.eq.s32.totalorder %s18, 1
      %p35 = por %p33, %p34
      %p36 = scmp.ne.s32.totalorder %s28, %s31
      %p37 = scmp.eq.s32.totalorder %s18, 0
      %p38 = por %p36, %p37
      %p39 = scmp.ne.s32.totalorder %s28, %s31
      %p40 = scmp.eq.s32.totalorder %s23, 1
      %p41 = por %p39, %p40
      %p42 = scmp.ne.s32.totalorder %s31, %s32
      %p43 = scmp.eq.s32.totalorder %s23, 0
      %p44 = por %p42, %p43
      %p45 = scmp.ne.s32.totalorder %s31, %s32
      %p46 = scmp.eq.s32.totalorder %s24, 1
      %p47 = por %p45, %p46
      %p49 = scmp.ne.s32.totalorder %s32, %s48
      %p50 = scmp.eq.s32.totalorder %s24, 0
      %p51 = por %p49, %p50
      %s52 = ssub.s32 %s18, %s25
      %p53 = scmp.eq.s32.totalorder %s52, 0
      %s55 = sadd.s32 %s54, 1
      %s56 = scalar_select %p53, %s54, %s55
      %p59 = pneg %p53
      %p60 = scmp.eq.s32.totalorder %s18, 1
      %p61 = por %p59, %p60
      %p62 = scmp.ne.s32.totalorder %s54, %s57
      %p63 = scmp.eq.s32.totalorder %s18, 0
      %p64 = por %p62, %p63
      %p65 = scmp.ne.s32.totalorder %s54, %s57
      %p66 = scmp.eq.s32.totalorder %s23, 1
      %p67 = por %p65, %p66
      %p68 = scmp.ne.s32.totalorder %s57, %s58
      %p69 = scmp.eq.s32.totalorder %s23, 0
      %p70 = por %p68, %p69
      %p71 = scmp.ne.s32.totalorder %s57, %s58
      %p72 = scmp.eq.s32.totalorder %s24, 1
      %p73 = por %p71, %p72
      %p75 = scmp.ne.s32.totalorder %s58, %s74
      %p76 = scmp.eq.s32.totalorder %s24, 0
      %p77 = por %p75, %p76
      %s78 = ssub.s32 %s18, %s25
      %p79 = scmp.eq.s32.totalorder %s78, 0
      %s81 = sadd.s32 %s80, 1
      %s82 = scalar_select %p79, %s80, %s81
      %p85 = pneg %p79
      %p86 = scmp.eq.s32.totalorder %s18, 1
      %p87 = por %p85, %p86
      %p88 = scmp.ne.s32.totalorder %s80, %s83
      %p89 = scmp.eq.s32.totalorder %s18, 0
      %p90 = por %p88, %p89
      %p91 = scmp.ne.s32.totalorder %s80, %s83
      %p92 = scmp.eq.s32.totalorder %s23, 1
      %p93 = por %p91, %p92
      %p94 = scmp.ne.s32.totalorder %s83, %s84
      %p95 = scmp.eq.s32.totalorder %s23, 0
      %p96 = por %p94, %p95
      %p97 = scmp.ne.s32.totalorder %s83, %s84
      %p98 = scmp.eq.s32.totalorder %s24, 1
      %p99 = por %p97, %p98
      %p101 = scmp.ne.s32.totalorder %s84, %s100
      %p102 = scmp.eq.s32.totalorder %s24, 0
      %p103 = por %p101, %p102
      %s104 = ssub.s32 %s18, %s25
      %p105 = scmp.eq.s32.totalorder %s104, 0
      %s107 = sadd.s32 %s106, 1
      %s108 = scalar_select %p105, %s106, %s107
      %p111 = pneg %p105
      %p112 = scmp.eq.s32.totalorder %s18, 1
      %p113 = por %p111, %p112
      %p114 = scmp.ne.s32.totalorder %s106, %s109
      %p115 = scmp.eq.s32.totalorder %s18, 0
      %p116 = por %p114, %p115
      %p117 = scmp.ne.s32.totalorder %s106, %s109
      %p118 = scmp.eq.s32.totalorder %s23, 1
      %p119 = por %p117, %p118
      %p120 = scmp.ne.s32.totalorder %s109, %s110
      %p121 = scmp.eq.s32.totalorder %s23, 0
      %p122 = por %p120, %p121
      %p123 = scmp.ne.s32.totalorder %s109, %s110
      %p124 = scmp.eq.s32.totalorder %s24, 1
      %p125 = por %p123, %p124
      %p127 = scmp.ne.s32.totalorder %s110, %s126
      %p128 = scmp.eq.s32.totalorder %s24, 0
      %p129 = por %p127, %p128
      %s131 = sadd.s32 %s130, 1
      %p134 = scmp.eq.s32.totalorder %s18, 1
      %p135 = scmp.ne.s32.totalorder %s130, %s132
      %p136 = scmp.eq.s32.totalorder %s18, 0
      %p137 = por %p135, %p136
      %p138 = scmp.ne.s32.totalorder %s130, %s132
      %p139 = scmp.eq.s32.totalorder %s23, 1
      %p140 = por %p138, %p139
      %p141 = scmp.ne.s32.totalorder %s132, %s133
      %p142 = scmp.eq.s32.totalorder %s23, 0
      %p143 = por %p141, %p142
      %p144 = scmp.ne.s32.totalorder %s132, %s133
      %p145 = scmp.eq.s32.totalorder %s24, 1
      %p146 = por %p144, %p145
      %p148 = scmp.ne.s32.totalorder %s133, %s147
      %p149 = scmp.eq.s32.totalorder %s24, 0
      %p150 = por %p148, %p149
      %s152 = sadd.s32 %s151, 1
      %p155 = scmp.eq.s32.totalorder %s18, 1
      %p156 = scmp.ne.s32.totalorder %s151, %s153
      %p157 = scmp.eq.s32.totalorder %s18, 0
      %p158 = por %p156, %p157
      %p159 = scmp.ne.s32.totalorder %s151, %s153
      %p160 = scmp.eq.s32.totalorder %s23, 1
      %p161 = por %p159, %p160
      %p162 = scmp.ne.s32.totalorder %s153, %s154
      %p163 = scmp.eq.s32.totalorder %s23, 0
      %p164 = por %p162, %p163
      %p165 = scmp.ne.s32.totalorder %s153, %s154
      %p166 = scmp.eq.s32.totalorder %s24, 1
      %p167 = por %p165, %p166
      %p169 = scmp.ne.s32.totalorder %s154, %s168
      %p170 = scmp.eq.s32.totalorder %s24, 0
      %p171 = por %p169, %p170
      %s173 = sadd.s32 %s172, 1
      %p176 = scmp.eq.s32.totalorder %s18, 1
      %p177 = scmp.ne.s32.totalorder %s172, %s174
      %p178 = scmp.eq.s32.totalorder %s18, 0
      %p179 = por %p177, %p178
      %p180 = scmp.ne.s32.totalorder %s172, %s174
      %p181 = scmp.eq.s32.totalorder %s23, 1
      %p182 = por %p180, %p181
      %p183 = scmp.ne.s32.totalorder %s174, %s175
      %p184 = scmp.eq.s32.totalorder %s23, 0
      %p185 = por %p183, %p184
      %p186 = scmp.ne.s32.totalorder %s174, %s175
      %p187 = scmp.eq.s32.totalorder %s24, 1
      %p188 = por %p186, %p187
      %p190 = scmp.ne.s32.totalorder %s175, %s189
      %p191 = scmp.eq.s32.totalorder %s24, 0
      %p192 = por %p190, %p191
      %s193 = ssub.s32 %s18, %s25
      %p194 = scmp.eq.s32.totalorder %s193, 0
      %s196 = sadd.s32 %s195, 1
      %s197 = scalar_select %p194, %s195, %s196
      %p200 = pneg %p194
      %p201 = scmp.eq.s32.totalorder %s18, 1
      %p202 = por %p200, %p201
      %p203 = scmp.ne.s32.totalorder %s195, %s198
      %p204 = scmp.eq.s32.totalorder %s18, 0
      %p205 = por %p203, %p204
      %p206 = scmp.ne.s32.totalorder %s195, %s198
      %p207 = scmp.eq.s32.totalorder %s23, 1
      %p208 = por %p206, %p207
      %p209 = scmp.ne.s32.totalorder %s198, %s199
      %p210 = scmp.eq.s32.totalorder %s23, 0
      %p211 = por %p209, %p210
      %p212 = scmp.ne.s32.totalorder %s198, %s199
      %p213 = scmp.eq.s32.totalorder %s24, 1
      %p214 = por %p212, %p213
      %p216 = scmp.ne.s32.totalorder %s199, %s215
      %p217 = scmp.eq.s32.totalorder %s24, 0
      %p218 = por %p216, %p217
      %s219 = ssub.s32 %s18, %s25
      %p220 = scmp.eq.s32.totalorder %s219, 0
      %s222 = sadd.s32 %s221, 1
      %s223 = scalar_select %p220, %s221, %s222
      %p226 = pneg %p220
      %p227 = scmp.eq.s32.totalorder %s18, 1
      %p228 = por %p226, %p227
      %p229 = scmp.ne.s32.totalorder %s221, %s224
      %p230 = scmp.eq.s32.totalorder %s18, 0
      %p231 = por %p229, %p230
      %p232 = scmp.ne.s32.totalorder %s221, %s224
      %p233 = scmp.eq.s32.totalorder %s23, 1
      %p234 = por %p232, %p233
      %p235 = scmp.ne.s32.totalorder %s224, %s225
      %p236 = scmp.eq.s32.totalorder %s23, 0
      %p237 = por %p235, %p236
      %p238 = scmp.ne.s32.totalorder %s224, %s225
      %p239 = scmp.eq.s32.totalorder %s24, 1
      %p240 = por %p238, %p239
      %p242 = scmp.ne.s32.totalorder %s225, %s241
      %p243 = scmp.eq.s32.totalorder %s24, 0
      %p244 = por %p242, %p243
      %p245 = scmp.le.s32.totalorder 1, %s18
      %p246 = scmp.lt.s32.totalorder %s18, 3
      %p247 = pnand %p245, %p246
      %p248 = pneg %p247
      // Predicated region
      $region9: #{mist_videoqa_forward.1} parent=5 // pred_check
        _
      $region10: #{mist_videoqa_forward.1} parent=5 // pred_check_branch
        %250 = sbr.rel (%p247) target = $region12
      $region11: #{mist_videoqa_forward.1} parent=5 // pred_region
        %s251 = ssub.s32 %s18, 1
        // Predicated region
        $region13: #{mist_videoqa_forward.1} parent=11 // pred_check
          %p252 = pneg %p143
        $region14: #{mist_videoqa_forward.1} parent=11 // pred_check_branch
          %254 = sbr.rel (%p252) target = $region16
        $region15: #{mist_videoqa_forward.1} parent=11 // pred_region
          _
        $region16: #{mist_videoqa_forward.1} parent=11 // pred_fallthru
          _
        // Predicated region
        $region17: #{mist_videoqa_forward.1} parent=11 // pred_check
          %p255 = pneg %p164
        $region18: #{mist_videoqa_forward.1} parent=11 // pred_check_branch
          %257 = sbr.rel (%p255) target = $region20
        $region19: #{mist_videoqa_forward.1} parent=11 // pred_region
          _
        $region20: #{mist_videoqa_forward.1} parent=11 // pred_fallthru
          _
        // Predicated region
        $region21: #{mist_videoqa_forward.1} parent=11 // pred_check
          %p258 = pneg %p185
        $region22: #{mist_videoqa_forward.1} parent=11 // pred_check_branch
          %260 = sbr.rel (%p258) target = $region24
        $region23: #{mist_videoqa_forward.1} parent=11 // pred_region
          _
        $region24: #{mist_videoqa_forward.1} parent=11 // pred_fallthru
          _
      $region12: #{mist_videoqa_forward.1} parent=5 // pred_fallthru
        _
      %p261 = scmp.lt.s32.totalorder %s18, 2
      // Predicated region
      $region25: #{mist_videoqa_forward.1} parent=5 // pred_check
        %p262 = pneg %p261
      $region26: #{mist_videoqa_forward.1} parent=5 // pred_check_branch
        %264 = sbr.rel (%p262) target = $region28
      $region27: #{mist_videoqa_forward.1} parent=5 // pred_region
        // Predicated region
        $region29: #{mist_videoqa_forward.1} parent=27 // pred_check
          %p265 = pneg %p38
        $region30: #{mist_videoqa_forward.1} parent=27 // pred_check_branch
          %267 = sbr.rel (%p265) target = $region32
        $region31: #{mist_videoqa_forward.1} parent=27 // pred_region
          %s268 = smul.u32 2, %s18
          %p269 = scmp.lt.s32.totalorder %s268, 3
          %s270 = scalar_select %p269, %s268, 3
          %s271 = smul.addr %s270, 8
          %s272 = scalar_lea.vmem %s0, %s271
          %s273 = smul.u32 2, %s18
        $region32: #{mist_videoqa_forward.1} parent=27 // pred_fallthru
          _
        // Predicated region
        $region33: #{mist_videoqa_forward.1} parent=27 // pred_check
          %p274 = pneg %p64
        $region34: #{mist_videoqa_forward.1} parent=27 // pred_check_branch
          %276 = sbr.rel (%p274) target = $region36
        $region35: #{mist_videoqa_forward.1} parent=27 // pred_region
          %s277 = smul.u32 2, %s18
          %p278 = scmp.lt.s32.totalorder %s277, 3
          %s279 = scalar_select %p278, %s277, 3
          %s280 = scalar_lea.vmem %s1, %s279
          %s281 = smul.u32 2, %s18
        $region36: #{mist_videoqa_forward.1} parent=27 // pred_fallthru
          _
        // Predicated region
        $region37: #{mist_videoqa_forward.1} parent=27 // pred_check
          %p282 = pneg %p90
        $region38: #{mist_videoqa_forward.1} parent=27 // pred_check_branch
          %284 = sbr.rel (%p282) target = $region40
        $region39: #{mist_videoqa_forward.1} parent=27 // pred_region
          %s285 = smul.u32 2, %s18
          %p286 = scmp.lt.s32.totalorder %s285, 3
          %s287 = scalar_select %p286, %s285, 3
          %s288 = smul.addr %s287, 2
          %s289 = smul.addr %s288, 4
          %s290 = scalar_lea.vmem %s2, %s289
          %s291 = smul.u32 2, %s18
        $region40: #{mist_videoqa_forward.1} parent=27 // pred_fallthru
          _
        // Predicated region
        $region41: #{mist_videoqa_forward.1} parent=27 // pred_check
          %p292 = pneg %p116
        $region42: #{mist_videoqa_forward.1} parent=27 // pred_check_branch
          %294 = sbr.rel (%p292) target = $region44
        $region43: #{mist_videoqa_forward.1} parent=27 // pred_region
          %s295 = smul.u32 2, %s18
          %p296 = scmp.lt.s32.totalorder %s295, 3
          %s297 = scalar_select %p296, %s295, 3
          %s298 = smul.addr %s297, 4
          %s299 = smul.addr %s298, 4
          %s300 = scalar_lea.vmem %s3, %s299
          %s301 = smul.u32 2, %s18
        $region44: #{mist_videoqa_forward.1} parent=27 // pred_fallthru
          _
      $region28: #{mist_videoqa_forward.1} parent=5 // pred_fallthru
        _
      %p302 = scmp.le.s32.totalorder 1, %s18
      %p303 = scmp.lt.s32.totalorder %s18, 3
      %p304 = pnand %p302, %p303
      %p305 = pneg %p304
      // Predicated region
      $region45: #{mist_videoqa_forward.1} parent=5 // pred_check
        _
      $region46: #{mist_videoqa_forward.1} parent=5 // pred_check_branch
        %307 = sbr.rel (%p304) target = $region48
      $region47: #{mist_videoqa_forward.1} parent=5 // pred_region
        %s308 = ssub.s32 %s18, 1
        %s309 = smul.u32 2, %s23
        %p310 = scmp.lt.s32.totalorder %s309, 3
        %s311 = scalar_select %p310, %s309, 3
        %s312 = smul.addr %s311, 8
        %s313 = scalar_lea.vmem %s0, %s312
        %p314 = pneg %p44
        %p315 = pneg %p41
        %s316 = smul.u32 2, %s23
        %p317 = scmp.lt.s32.totalorder %s316, 3
        %s318 = scalar_select %p317, %s316, 3
        %s319 = scalar_lea.vmem %s1, %s318
        %p320 = pneg %p70
        %p321 = pneg %p67
        %s322 = smul.u32 2, %s23
        %p323 = scmp.lt.s32.totalorder %s322, 3
        %s324 = scalar_select %p323, %s322, 3
        %s325 = smul.addr %s324, 2
        %s326 = smul.addr %s325, 4
        %s327 = scalar_lea.vmem %s2, %s326
        %p328 = pneg %p96
        %p329 = pneg %p93
        %s330 = smul.u32 2, %s23
        %p331 = scmp.lt.s32.totalorder %s330, 3
        %s332 = scalar_select %p331, %s330, 3
        %s333 = smul.addr %s332, 4
        %s334 = smul.addr %s333, 4
        %s335 = scalar_lea.vmem %s3, %s334
        %p336 = pneg %p122
        %p337 = pneg %p119
        %p338 = pneg %p143
        %p339 = pneg %p140
        %p340 = pneg %p164
        %p341 = pneg %p161
        %p342 = pneg %p185
        %p343 = pneg %p182
        %p344 = pneg %p211
        %p345 = pneg %p208
        %s346 = smul.u32 2, %s23
        %p347 = scmp.lt.s32.totalorder %s346, 3
        %s348 = scalar_select %p347, %s346, 3
        %s349 = scalar_lea.vmem %s7, %s348
        %p350 = pneg %p237
        %p351 = pneg %p234
        %s352 = sand.u32 %s224, 1
        %s353 = scalar_lea.sflag [#allocation3], %s352
        %s354 = sand.u32 %s224, 1
        %s355 = smul.addr %s354, 16
        %s356 = scalar_lea.vmem [#allocation2], %s355
        %s357 = smul.u32 2, %s23
        %p358 = scmp.lt.s32.totalorder %s357, 3
        %s359 = scalar_select %p358, %s357, 3
        %s360 = smul.addr %s359, 8
        %s361 = scalar_lea.vmem %s0, %s360
        %s362 = smul.u32 2, %s23
        %s363 = smul.u32 2, %s23
        %p364 = scmp.lt.s32.totalorder %s363, 3
        %s365 = scalar_select %p364, %s363, 3
        %s366 = scalar_lea.vmem %s1, %s365
        %s367 = smul.u32 2, %s23
        %s368 = smul.u32 2, %s23
        %p369 = scmp.lt.s32.totalorder %s368, 3
        %s370 = scalar_select %p369, %s368, 3
        %s371 = smul.addr %s370, 2
        %s372 = smul.addr %s371, 4
        %s373 = scalar_lea.vmem %s2, %s372
        %s374 = smul.u32 2, %s23
        %s375 = smul.u32 2, %s23
        %p376 = scmp.lt.s32.totalorder %s375, 3
        %s377 = scalar_select %p376, %s375, 3
        %s378 = smul.addr %s377, 4
        %s379 = smul.addr %s378, 4
        %s380 = scalar_lea.vmem %s3, %s379
        %s381 = smul.u32 2, %s23
        %s382 = smul.u32 2, %s23
        %p383 = scmp.lt.s32.totalorder %s382, 3
        %s384 = scalar_select %p383, %s382, 3
        %s385 = scalar_lea.vmem %s7, %s384
        %s386 = smul.u32 2, %s23
        %s387 = smul.u32 2, %s23
        %v389 = vld [vmem:[%s361] sm:$0xff]
        %v390 = vld [vmem:[%s361 + $0x8] sm:$0xff]
        %v391 = vld [vmem:[%s4] sm:$0x1]
        %v393 = vlaneseq
        %v394 = vshrl.u32 %v393, 7
        %v395 = vsub.s32 0, %v394
        %v396 = vrot.slane %v391, %v395
        %v398 = vmul.f32 %v389, %v396
        %v399 = vmul.f32 %v390, %v396
        %vm400 = vcmask 261120
        %v401 = vsel %vm400, %v398, 0.0
        %402 = vadd.xlane.f32.xlu0 %v401
        %v403 = vpop.xlane.xlu0 %402
        %v404 = vsel %vm400, %v399, 0.0
        %405 = vadd.xlane.f32.xlu0 %v404
        %v406 = vpop.xlane.xlu0 %405
        %v407 = vld [vmem:[%s366] sm:$0x1]
        %v408 = vld [vmem:[%s366 + $0x1] sm:$0x1]
        %v411 = vlaneseq
        %v412 = vand.u32 %v411, 127
        %v413 = vlaneseq
        %v414 = vshrl.u32 %v413, 7
        %v415 = vsub.s32 %v412, %v414
        %v416 = vrot.slane %v403, %v415
        %v417 = vlaneseq
        %v418 = vshrl.u32 %v417, 7
        %v419 = vsub.s32 %v412, %v418
        %v420 = vrot.slane %v406, %v419
        %vm421 = vcmask 1041409
        %v422 = vsel %vm421, %v420, %v416
        %vm424 = vcmask 58368
        %v425 = vsel %vm424, %v422, -inf
        %426 = vmax.xlane.f32.xlu0 %v425
        %v427 = vpop.xlane.xlu0 %426
        %v429 = vlaneseq
        %v430 = vshrl.u32 %v429, 7
        %v431 = vsub.s32 0, %v430
        %v432 = vrot.slane %v427, %v431
        %v433 = vlaneseq
        %v434 = vshrl.u32 %v433, 7
        %v435 = vsub.s32 1, %v434
        %v436 = vrot.slane %v427, %v435
        %v439 = vsub.f32 %v403, %v432
        %v440 = vsub.f32 %v406, %v436
        %v441 = vmul.f32 %v439, 1.442695
        %v442 = vpow.pop %v441
        %v443 = vmul.f32 %v440, 1.442695
        %v444 = vpow.pop %v443
        %v447 = vlaneseq
        %v448 = vshrl.u32 %v447, 7
        %v449 = vsub.s32 0, %v448
        %v450 = vrot.slane %v407, %v449
        %v451 = vlaneseq
        %v452 = vshrl.u32 %v451, 7
        %v453 = vsub.s32 0, %v452
        %v454 = vrot.slane %v408, %v453
        %456 = vbcast.lane.b32.xlu0 %v450, 256
        %v457 = vpop.permute.xlu0 %456
        %459 = vbcast.lane.b32.xlu0 %v454, 256
        %v460 = vpop.permute.xlu0 %459
        %v463 = vmul.f32 %v442, %v457
        %v464 = vmul.f32 %v444, %v460
        %467 = vset.pattern.permute.xlu0 0
        %468 = vperm.xlu0 %467, %v463
        %v469 = vpop.permute.xlu0 %468
        %470 = vset.pattern.permute.xlu0 0
        %471 = vperm.xlu0 %470, %v464
        %v472 = vpop.permute.xlu0 %471
        %v473 = vlaneseq
        %v474 = vshrl.u32 %v473, 7
        %v475 = vsub.s32 %v412, %v474
        %v476 = vrot.slane %v469, %v475
        %v477 = vlaneseq
        %v478 = vshrl.u32 %v477, 7
        %v479 = vsub.s32 %v412, %v478
        %v480 = vrot.slane %v472, %v479
        %v481 = vsel %vm421, %v480, %v476
        %v483 = vsel %vm424, %v481, 0.0
        %484 = vadd.xlane.f32.xlu0 %v483
        %v485 = vpop.xlane.xlu0 %484
        %v486 = vadd.f32 %v485, 1e-12
        %v487 = vrcp.pop %v486
        %v489 = vlaneseq
        %v490 = vshrl.u32 %v489, 7
        %v491 = vsub.s32 0, %v490
        %v492 = vrot.slane %v487, %v491
        %v493 = vlaneseq
        %v494 = vshrl.u32 %v493, 7
        %v495 = vsub.s32 1, %v494
        %v496 = vrot.slane %v487, %v495
        %v499 = vmul.f32 %v463, %v492
        %v500 = vmul.f32 %v464, %v496
        %502 = vset.pattern.permute.xlu0 0
        %503 = vperm.xlu0 %502, %v499
        %v504 = vpop.permute.xlu0 %503
        %v505 = vlaneseq
        %v506 = vshrl.u32 %v505, 7
        %v507 = vsub.s32 %v412, %v506
        %v508 = vrot.slane %v504, %v507
        %vm509 = vcmask 64512
        %v510 = vsel %vm509, %v508, 0
        %512 = vmatprep.subr.mxu0 0.0
        %513 = vmatpush1.msra.mxu0 0.0
        %514 = vmatprep.subr.mxu0 0.0
        %515 = vmatpush1.msra.mxu0 0.0
        %516 = vmatprep.subr.mxu0 0.0
        %517 = vmatpush1.msra.mxu0 0.0
        %518 = vmatprep.subr.mxu0 0.0
        %519 = vmatpush1.msra.mxu0 0.0
        %520 = vmatprep.subr.mxu0 0.0
        %521 = vmatpush1.msra.mxu0 0.0
        %522 = vmatprep.subr.mxu0 0.0
        %523 = vmatpush1.msra.mxu0 0.0
        %524 = vmatprep.subr.mxu0 0.0
        %525 = vmatpush1.msra.mxu0 0.0
        %526 = vmatprep.subr.mxu0 0.0
        %527 = vmatpush1.msra.mxu0 0.0
        %528 = vmatprep.subr.mxu0 0.0
        %529 = vmatpush1.msra.mxu0 0.0
        %530 = vmatprep.subr.mxu0 0.0
        %531 = vmatpush1.msra.mxu0 0.0
        %532 = vmatprep.subr.mxu0 0.0
        %533 = vmatpush1.msra.mxu0 0.0
        %534 = vmatprep.subr.mxu0 0.0
        %535 = vmatpush1.msra.mxu0 0.0
        %536 = vmatprep.subr.mxu0 0.0
        %537 = vmatpush1.msra.mxu0 0.0
        %538 = vmatprep.subr.mxu0 0.0
        %539 = vmatpush1.msra.mxu0 0.0
        %540 = vmatprep.subr.mxu0 0.0
        %541 = vmatpush1.msra.mxu0 0.0
        %542 = vmatprep.subr.mxu0 0.0
        %543 = vmatpush1.msra.mxu0 %v389
        %544 = vmatprep.subr.mxu0 0.0
        %545 = vmatpush2.msra.mxu0 0.0
        %546 = vmatprep.subr.mxu0 0.0
        %547 = vmatpush2.msra.mxu0 0.0
        %548 = vmatprep.subr.mxu0 0.0
        %549 = vmatpush2.msra.mxu0 0.0
        %550 = vmatprep.subr.mxu0 0.0
        %551 = vmatpush2.msra.mxu0 0.0
        %552 = vmatprep.subr.mxu0 0.0
        %553 = vmatpush2.msra.mxu0 0.0
        %554 = vmatprep.subr.mxu0 0.0
        %555 = vmatpush2.msra.mxu0 0.0
        %556 = vmatprep.subr.mxu0 0.0
        %557 = vmatpush2.msra.mxu0 0.0
        %558 = vmatprep.subr.mxu0 0.0
        %559 = vmatpush2.msra.mxu0 0.0
        %560 = vmatprep.subr.mxu0 0.0
        %561 = vmatpush2.msra.mxu0 0.0
        %562 = vmatprep.subr.mxu0 0.0
        %563 = vmatpush2.msra.mxu0 0.0
        %564 = vmatprep.subr.mxu0 0.0
        %565 = vmatpush2.msra.mxu0 0.0
        %566 = vmatprep.subr.mxu0 0.0
        %567 = vmatpush2.msra.mxu0 0.0
        %568 = vmatprep.subr.mxu0 0.0
        %569 = vmatpush2.msra.mxu0 0.0
        %570 = vmatprep.subr.mxu0 0.0
        %571 = vmatpush2.msra.mxu0 0.0
        %572 = vmatprep.subr.mxu0 0.0
        %573 = vmatpush2.msra.mxu0 0.0
        %574 = vmatprep.subr.mxu0 0.0
        %575 = vmatpush2.msra.mxu0 0.0
        %576 = vmatprep.mubr.f32.mxu0 0.0
        %577 = vmatmul.mubr.f32.gmra.mxu0 %v510
        %v578 = vpop.f32.mrf.mxu0
        %v579 = vadd.f32 0.0, %v578
        %v580 = vpop.f32.mrf.mxu0
        %581 = vdwg.mxu0
        %583 = vset.pattern.permute.xlu0 0
        %584 = vperm.xlu0 %583, %v500
        %v585 = vpop.permute.xlu0 %584
        %v586 = vlaneseq
        %v587 = vshrl.u32 %v586, 7
        %v588 = vsub.s32 %v412, %v587
        %v589 = vrot.slane %v585, %v588
        %v590 = vsel %vm509, %v589, 0
        %592 = vmatprep.subr.mxu0 0.0
        %593 = vmatpush1.msra.mxu0 0.0
        %594 = vmatprep.subr.mxu0 0.0
        %595 = vmatpush1.msra.mxu0 0.0
        %596 = vmatprep.subr.mxu0 0.0
        %597 = vmatpush1.msra.mxu0 0.0
        %598 = vmatprep.subr.mxu0 0.0
        %599 = vmatpush1.msra.mxu0 0.0
        %600 = vmatprep.subr.mxu0 0.0
        %601 = vmatpush1.msra.mxu0 0.0
        %602 = vmatprep.subr.mxu0 0.0
        %603 = vmatpush1.msra.mxu0 0.0
        %604 = vmatprep.subr.mxu0 0.0
        %605 = vmatpush1.msra.mxu0 0.0
        %606 = vmatprep.subr.mxu0 0.0
        %607 = vmatpush1.msra.mxu0 0.0
        %608 = vmatprep.subr.mxu0 0.0
        %609 = vmatpush1.msra.mxu0 0.0
        %610 = vmatprep.subr.mxu0 0.0
        %611 = vmatpush1.msra.mxu0 0.0
        %612 = vmatprep.subr.mxu0 0.0
        %613 = vmatpush1.msra.mxu0 0.0
        %614 = vmatprep.subr.mxu0 0.0
        %615 = vmatpush1.msra.mxu0 0.0
        %616 = vmatprep.subr.mxu0 0.0
        %617 = vmatpush1.msra.mxu0 0.0
        %618 = vmatprep.subr.mxu0 0.0
        %619 = vmatpush1.msra.mxu0 0.0
        %620 = vmatprep.subr.mxu0 0.0
        %621 = vmatpush1.msra.mxu0 0.0
        %622 = vmatprep.subr.mxu0 0.0
        %623 = vmatpush1.msra.mxu0 %v390
        %624 = vmatprep.subr.mxu0 0.0
        %625 = vmatpush2.msra.mxu0 0.0
        %626 = vmatprep.subr.mxu0 0.0
        %627 = vmatpush2.msra.mxu0 0.0
        %628 = vmatprep.subr.mxu0 0.0
        %629 = vmatpush2.msra.mxu0 0.0
        %630 = vmatprep.subr.mxu0 0.0
        %631 = vmatpush2.msra.mxu0 0.0
        %632 = vmatprep.subr.mxu0 0.0
        %633 = vmatpush2.msra.mxu0 0.0
        %634 = vmatprep.subr.mxu0 0.0
        %635 = vmatpush2.msra.mxu0 0.0
        %636 = vmatprep.subr.mxu0 0.0
        %637 = vmatpush2.msra.mxu0 0.0
        %638 = vmatprep.subr.mxu0 0.0
        %639 = vmatpush2.msra.mxu0 0.0
        %640 = vmatprep.subr.mxu0 0.0
        %641 = vmatpush2.msra.mxu0 0.0
        %642 = vmatprep.subr.mxu0 0.0
        %643 = vmatpush2.msra.mxu0 0.0
        %644 = vmatprep.subr.mxu0 0.0
        %645 = vmatpush2.msra.mxu0 0.0
        %646 = vmatprep.subr.mxu0 0.0
        %647 = vmatpush2.msra.mxu0 0.0
        %648 = vmatprep.subr.mxu0 0.0
        %649 = vmatpush2.msra.mxu0 0.0
        %650 = vmatprep.subr.mxu0 0.0
        %651 = vmatpush2.msra.mxu0 0.0
        %652 = vmatprep.subr.mxu0 0.0
        %653 = vmatpush2.msra.mxu0 0.0
        %654 = vmatprep.subr.mxu0 0.0
        %655 = vmatpush2.msra.mxu0 0.0
        %656 = vmatprep.mubr.f32.mxu0 0.0
        %657 = vmatmul.mubr.f32.gmra.mxu0 %v590
        %v658 = vpop.f32.mrf.mxu0
        %v659 = vadd.f32 0.0, %v658
        %v660 = vpop.f32.mrf.mxu0
        %661 = vdwg.mxu0
        %v662 = vld [vmem:[%s373] sm:$0xf]
        %v663 = vld [vmem:[%s373 + $0x4] sm:$0xf]
        %v664 = vld [vmem:[%s373 + $0x8] sm:$0xf]
        %v665 = vld [vmem:[%s373 + $0xc] sm:$0xf]
        %v666 = vunpack.c.l.bf16 %v662
        %v667 = vunpack.c.l.bf16 %v663
        %v668 = vunpack.c.l.bf16 %v664
        %v669 = vunpack.c.l.bf16 %v665
        %v670 = vmul.f32 %v666, %v666
        %v671 = vmul.f32 %v667, %v667
        %v672 = vmul.f32 %v668, %v668
        %v673 = vmul.f32 %v669, %v669
        %v674 = vsel %vm400, %v670, 0.0
        %675 = vadd.xlane.f32.xlu0 %v674
        %v676 = vpop.xlane.xlu0 %675
        %v677 = vsel %vm400, %v671, 0.0
        %678 = vadd.xlane.f32.xlu0 %v677
        %v679 = vpop.xlane.xlu0 %678
        %v680 = vsel %vm400, %v672, 0.0
        %681 = vadd.xlane.f32.xlu0 %v680
        %v682 = vpop.xlane.xlu0 %681
        %v683 = vsel %vm400, %v673, 0.0
        %684 = vadd.xlane.f32.xlu0 %v683
        %v685 = vpop.xlane.xlu0 %684
        %v686 = vmax.f32 %v676, 1e-24
        %v687 = vmax.f32 %v679, 1e-24
        %v688 = vmax.f32 %v682, 1e-24
        %v689 = vmax.f32 %v685, 1e-24
        %v690 = vrsqrt.pop %v686
        %v691 = vrsqrt.pop %v687
        %v692 = vrsqrt.pop %v688
        %v693 = vrsqrt.pop %v689
        %v694 = vmul.f32 %v666, %v690
        %v695 = vmul.f32 %v667, %v691
        %v696 = vmul.f32 %v668, %v692
        %v697 = vmul.f32 %v669, %v693
        %v699 = vsel %vm400, %v579, 0
        %v702 = vsel %vm400, %v694, 0
        %v705 = vsel %vm400, %v695, 0
        %707 = vmatprep.subr.mxu0 0.0
        %708 = vmatpush1.xpose.msra.mxu0 0.0
        %709 = vmatprep.subr.mxu0 0.0
        %710 = vmatpush1.xpose.msra.mxu0 0.0
        %711 = vmatprep.subr.mxu0 0.0
        %712 = vmatpush1.xpose.msra.mxu0 0.0
        %713 = vmatprep.subr.mxu0 0.0
        %714 = vmatpush1.xpose.msra.mxu0 0.0
        %715 = vmatprep.subr.mxu0 0.0
        %716 = vmatpush1.xpose.msra.mxu0 0.0
        %717 = vmatprep.subr.mxu0 0.0
        %718 = vmatpush1.xpose.msra.mxu0 0.0
        %719 = vmatprep.subr.mxu0 0.0
        %720 = vmatpush1.xpose.msra.mxu0 0.0
        %721 = vmatprep.subr.mxu0 0.0
        %722 = vmatpush1.xpose.msra.mxu0 0.0
        %723 = vmatprep.subr.mxu0 0.0
        %724 = vmatpush1.xpose.msra.mxu0 0.0
        %725 = vmatprep.subr.mxu0 0.0
        %726 = vmatpush1.xpose.msra.mxu0 0.0
        %727 = vmatprep.subr.mxu0 0.0
        %728 = vmatpush1.xpose.msra.mxu0 0.0
        %729 = vmatprep.subr.mxu0 0.0
        %730 = vmatpush1.xpose.msra.mxu0 0.0
        %731 = vmatprep.subr.mxu0 0.0
        %732 = vmatpush1.xpose.msra.mxu0 0.0
        %733 = vmatprep.subr.mxu0 0.0
        %734 = vmatpush1.xpose.msra.mxu0 0.0
        %735 = vmatprep.subr.mxu0 0.0
        %736 = vmatpush1.xpose.msra.mxu0 %v705
        %737 = vmatprep.subr.mxu0 0.0
        %738 = vmatpush1.xpose.msra.mxu0 %v702
        %739 = vmatprep.subr.mxu0 0.0
        %740 = vmatpush2.xpose.msra.mxu0 0.0
        %741 = vmatprep.subr.mxu0 0.0
        %742 = vmatpush2.xpose.msra.mxu0 0.0
        %743 = vmatprep.subr.mxu0 0.0
        %744 = vmatpush2.xpose.msra.mxu0 0.0
        %745 = vmatprep.subr.mxu0 0.0
        %746 = vmatpush2.xpose.msra.mxu0 0.0
        %747 = vmatprep.subr.mxu0 0.0
        %748 = vmatpush2.xpose.msra.mxu0 0.0
        %749 = vmatprep.subr.mxu0 0.0
        %750 = vmatpush2.xpose.msra.mxu0 0.0
        %751 = vmatprep.subr.mxu0 0.0
        %752 = vmatpush2.xpose.msra.mxu0 0.0
        %753 = vmatprep.subr.mxu0 0.0
        %754 = vmatpush2.xpose.msra.mxu0 0.0
        %755 = vmatprep.subr.mxu0 0.0
        %756 = vmatpush2.xpose.msra.mxu0 0.0
        %757 = vmatprep.subr.mxu0 0.0
        %758 = vmatpush2.xpose.msra.mxu0 0.0
        %759 = vmatprep.subr.mxu0 0.0
        %760 = vmatpush2.xpose.msra.mxu0 0.0
        %761 = vmatprep.subr.mxu0 0.0
        %762 = vmatpush2.xpose.msra.mxu0 0.0
        %763 = vmatprep.subr.mxu0 0.0
        %764 = vmatpush2.xpose.msra.mxu0 0.0
        %765 = vmatprep.subr.mxu0 0.0
        %766 = vmatpush2.xpose.msra.mxu0 0.0
        %767 = vmatprep.subr.mxu0 0.0
        %768 = vmatpush2.xpose.msra.mxu0 0.0
        %769 = vmatprep.subr.mxu0 0.0
        %770 = vmatpush2.xpose.msra.mxu0 0.0
        %771 = vmatprep.mubr.f32.mxu0 0.0
        %772 = vmatmul.mubr.f32.gmra.mxu0 %v699
        %v773 = vpop.f32.mrf.mxu0
        %v774 = vadd.f32 0.0, %v773
        %v775 = vpop.f32.mrf.mxu0
        %776 = vdwg.mxu0
        %v778 = vsel %vm400, %v659, 0
        %v781 = vsel %vm400, %v696, 0
        %v784 = vsel %vm400, %v697, 0
        %786 = vmatprep.subr.mxu0 0.0
        %787 = vmatpush1.xpose.msra.mxu0 0.0
        %788 = vmatprep.subr.mxu0 0.0
        %789 = vmatpush1.xpose.msra.mxu0 0.0
        %790 = vmatprep.subr.mxu0 0.0
        %791 = vmatpush1.xpose.msra.mxu0 0.0
        %792 = vmatprep.subr.mxu0 0.0
        %793 = vmatpush1.xpose.msra.mxu0 0.0
        %794 = vmatprep.subr.mxu0 0.0
        %795 = vmatpush1.xpose.msra.mxu0 0.0
        %796 = vmatprep.subr.mxu0 0.0
        %797 = vmatpush1.xpose.msra.mxu0 0.0
        %798 = vmatprep.subr.mxu0 0.0
        %799 = vmatpush1.xpose.msra.mxu0 0.0
        %800 = vmatprep.subr.mxu0 0.0
        %801 = vmatpush1.xpose.msra.mxu0 0.0
        %802 = vmatprep.subr.mxu0 0.0
        %803 = vmatpush1.xpose.msra.mxu0 0.0
        %804 = vmatprep.subr.mxu0 0.0
        %805 = vmatpush1.xpose.msra.mxu0 0.0
        %806 = vmatprep.subr.mxu0 0.0
        %807 = vmatpush1.xpose.msra.mxu0 0.0
        %808 = vmatprep.subr.mxu0 0.0
        %809 = vmatpush1.xpose.msra.mxu0 0.0
        %810 = vmatprep.subr.mxu0 0.0
        %811 = vmatpush1.xpose.msra.mxu0 0.0
        %812 = vmatprep.subr.mxu0 0.0
        %813 = vmatpush1.xpose.msra.mxu0 0.0
        %814 = vmatprep.subr.mxu0 0.0
        %815 = vmatpush1.xpose.msra.mxu0 %v784
        %816 = vmatprep.subr.mxu0 0.0
        %817 = vmatpush1.xpose.msra.mxu0 %v781
        %818 = vmatprep.subr.mxu0 0.0
        %819 = vmatpush2.xpose.msra.mxu0 0.0
        %820 = vmatprep.subr.mxu0 0.0
        %821 = vmatpush2.xpose.msra.mxu0 0.0
        %822 = vmatprep.subr.mxu0 0.0
        %823 = vmatpush2.xpose.msra.mxu0 0.0
        %824 = vmatprep.subr.mxu0 0.0
        %825 = vmatpush2.xpose.msra.mxu0 0.0
        %826 = vmatprep.subr.mxu0 0.0
        %827 = vmatpush2.xpose.msra.mxu0 0.0
        %828 = vmatprep.subr.mxu0 0.0
        %829 = vmatpush2.xpose.msra.mxu0 0.0
        %830 = vmatprep.subr.mxu0 0.0
        %831 = vmatpush2.xpose.msra.mxu0 0.0
        %832 = vmatprep.subr.mxu0 0.0
        %833 = vmatpush2.xpose.msra.mxu0 0.0
        %834 = vmatprep.subr.mxu0 0.0
        %835 = vmatpush2.xpose.msra.mxu0 0.0
        %836 = vmatprep.subr.mxu0 0.0
        %837 = vmatpush2.xpose.msra.mxu0 0.0
        %838 = vmatprep.subr.mxu0 0.0
        %839 = vmatpush2.xpose.msra.mxu0 0.0
        %840 = vmatprep.subr.mxu0 0.0
        %841 = vmatpush2.xpose.msra.mxu0 0.0
        %842 = vmatprep.subr.mxu0 0.0
        %843 = vmatpush2.xpose.msra.mxu0 0.0
        %844 = vmatprep.subr.mxu0 0.0
        %845 = vmatpush2.xpose.msra.mxu0 0.0
        %846 = vmatprep.subr.mxu0 0.0
        %847 = vmatpush2.xpose.msra.mxu0 0.0
        %848 = vmatprep.subr.mxu0 0.0
        %849 = vmatpush2.xpose.msra.mxu0 0.0
        %850 = vmatprep.mubr.f32.mxu0 0.0
        %851 = vmatmul.mubr.f32.gmra.mxu0 %v778
        %v852 = vpop.f32.mrf.mxu0
        %v853 = vadd.f32 0.0, %v852
        %v854 = vpop.f32.mrf.mxu0
        %855 = vdwg.mxu0
        %v856 = vpack.c.bf16 %v579, %v579
        %v857 = vpack.c.bf16 %v659, %v659
        %v858 = vld [vmem:[%s380] sm:$0xf]
        %v859 = vld [vmem:[%s380 + $0x4] sm:$0xf]
        %v860 = vld [vmem:[%s380 + $0x8] sm:$0xf]
        %v861 = vld [vmem:[%s380 + $0xc] sm:$0xf]
        %v862 = vld [vmem:[%s380 + $0x10] sm:$0xf]
        %v863 = vld [vmem:[%s380 + $0x14] sm:$0xf]
        %v864 = vld [vmem:[%s380 + $0x18] sm:$0xf]
        %v865 = vld [vmem:[%s380 + $0x1c] sm:$0xf]
        %v870 = vunpack.c.l.b16 %v858
        %v871 = vunpack.c.l.b16 %v859
        %v872 = vunpack.c.l.b16 %v860
        %v873 = vunpack.c.l.b16 %v861
        %v874 = vpack.c.b16 %v871, %v870
        %v875 = vpack.c.b16 %v873, %v872
        %v877 = vsel %vm400, %v856, 0
        %v880 = vsel %vm400, %v874, 0
        %v883 = vsel %vm400, %v875, 0
        %885 = vmatprep.subr.bf16.mxu0 0
        %886 = vmatpush1.bf16.xpose.msra.mxu0 0
        %887 = vmatprep.subr.bf16.mxu0 0
        %888 = vmatpush1.bf16.xpose.msra.mxu0 0
        %889 = vmatprep.subr.bf16.mxu0 0
        %890 = vmatpush1.bf16.xpose.msra.mxu0 0
        %891 = vmatprep.subr.bf16.mxu0 0
        %892 = vmatpush1.bf16.xpose.msra.mxu0 0
        %893 = vmatprep.subr.bf16.mxu0 0
        %894 = vmatpush1.bf16.xpose.msra.mxu0 0
        %895 = vmatprep.subr.bf16.mxu0 0
        %896 = vmatpush1.bf16.xpose.msra.mxu0 0
        %897 = vmatprep.subr.bf16.mxu0 0
        %898 = vmatpush1.bf16.xpose.msra.mxu0 %v883
        %899 = vmatprep.subr.bf16.mxu0 0
        %900 = vmatpush1.bf16.xpose.msra.mxu0 %v880
        %901 = vmatprep.subr.bf16.mxu0 0
        %902 = vmatpush2.bf16.xpose.msra.mxu0 0
        %903 = vmatprep.subr.bf16.mxu0 0
        %904 = vmatpush2.bf16.xpose.msra.mxu0 0
        %905 = vmatprep.subr.bf16.mxu0 0
        %906 = vmatpush2.bf16.xpose.msra.mxu0 0
        %907 = vmatprep.subr.bf16.mxu0 0
        %908 = vmatpush2.bf16.xpose.msra.mxu0 0
        %909 = vmatprep.subr.bf16.mxu0 0
        %910 = vmatpush2.bf16.xpose.msra.mxu0 0
        %911 = vmatprep.subr.bf16.mxu0 0
        %912 = vmatpush2.bf16.xpose.msra.mxu0 0
        %913 = vmatprep.subr.bf16.mxu0 0
        %914 = vmatpush2.bf16.xpose.msra.mxu0 0
        %915 = vmatprep.subr.bf16.mxu0 0
        %916 = vmatpush2.bf16.xpose.msra.mxu0 0
        %917 = vmatprep.mubr.bf16.mxu0 0
        %918 = vmatmul.mubr.bf16.gmra.mxu0 %v877
        %v919 = vpop.f32.mrf.mxu0
        %v920 = vadd.f32 0.0, %v919
        %v921 = vpop.f32.mrf.mxu0
        %v922 = vpop.f32.mrf.mxu0
        %v923 = vpop.f32.mrf.mxu0
        %924 = vdwg.mxu0
        %v929 = vunpack.c.l.b16 %v862
        %v930 = vunpack.c.l.b16 %v863
        %v931 = vunpack.c.l.b16 %v864
        %v932 = vunpack.c.l.b16 %v865
        %v933 = vpack.c.b16 %v930, %v929
        %v934 = vpack.c.b16 %v932, %v931
        %v936 = vsel %vm400, %v857, 0
        %v939 = vsel %vm400, %v933, 0
        %v942 = vsel %vm400, %v934, 0
        %944 = vmatprep.subr.bf16.mxu0 0
        %945 = vmatpush1.bf16.xpose.msra.mxu0 0
        %946 = vmatprep.subr.bf16.mxu0 0
        %947 = vmatpush1.bf16.xpose.msra.mxu0 0
        %948 = vmatprep.subr.bf16.mxu0 0
        %949 = vmatpush1.bf16.xpose.msra.mxu0 0
        %950 = vmatprep.subr.bf16.mxu0 0
        %951 = vmatpush1.bf16.xpose.msra.mxu0 0
        %952 = vmatprep.subr.bf16.mxu0 0
        %953 = vmatpush1.bf16.xpose.msra.mxu0 0
        %954 = vmatprep.subr.bf16.mxu0 0
        %955 = vmatpush1.bf16.xpose.msra.mxu0 0
        %956 = vmatprep.subr.bf16.mxu0 0
        %957 = vmatpush1.bf16.xpose.msra.mxu0 %v942
        %958 = vmatprep.subr.bf16.mxu0 0
        %959 = vmatpush1.bf16.xpose.msra.mxu0 %v939
        %960 = vmatprep.subr.bf16.mxu0 0
        %961 = vmatpush2.bf16.xpose.msra.mxu0 0
        %962 = vmatprep.subr.bf16.mxu0 0
        %963 = vmatpush2.bf16.xpose.msra.mxu0 0
        %964 = vmatprep.subr.bf16.mxu0 0
        %965 = vmatpush2.bf16.xpose.msra.mxu0 0
        %966 = vmatprep.subr.bf16.mxu0 0
        %967 = vmatpush2.bf16.xpose.msra.mxu0 0
        %968 = vmatprep.subr.bf16.mxu0 0
        %969 = vmatpush2.bf16.xpose.msra.mxu0 0
        %970 = vmatprep.subr.bf16.mxu0 0
        %971 = vmatpush2.bf16.xpose.msra.mxu0 0
        %972 = vmatprep.subr.bf16.mxu0 0
        %973 = vmatpush2.bf16.xpose.msra.mxu0 0
        %974 = vmatprep.subr.bf16.mxu0 0
        %975 = vmatpush2.bf16.xpose.msra.mxu0 0
        %976 = vmatprep.mubr.bf16.mxu0 0
        %977 = vmatmul.mubr.bf16.gmra.mxu0 %v936
        %v978 = vpop.f32.mrf.mxu0
        %v979 = vadd.f32 0.0, %v978
        %v980 = vpop.f32.mrf.mxu0
        %v981 = vpop.f32.mrf.mxu0
        %v982 = vpop.f32.mrf.mxu0
        %983 = vdwg.mxu0
        %986 = vrot.lane.b32.xlu0 %v920, 16
        %v987 = vpop.permute.xlu0 %986
        %988 = vrot.lane.b32.xlu0 %v979, 16
        %v989 = vpop.permute.xlu0 %988
        %vm992 = vcmask 130048
        %v993 = vsel %vm992, %v774, %v987
        %v994 = vsel %vm992, %v853, %v989
        %vm995 = vcmask 392192
        %v996 = vsel %vm995, %v993, 0.0
        %v997 = vsel %vm995, %v994, 0.0
        %998 = vst [vmem:[%s385] sm:$0x1] %v996
        %999 = vst [vmem:[%s385 + $0x1] sm:$0x1] %v997
        %v1000 = vld [vmem:[%s361] sm:$0xff]
        %v1001 = vld [vmem:[%s361 + $0x8] sm:$0xff]
        %v1002 = vpack.c.bf16 %v1000, %v1000
        %v1003 = vpack.c.bf16 %v1001, %v1001
        %v1004 = vld [vmem:[%s5] sm:$0xf]
        %v1005 = vld [vmem:[%s5 + $0x4] sm:$0xf]
        %v1006 = vld [vmem:[%s5 + $0x8] sm:$0xf]
        %v1007 = vld [vmem:[%s5 + $0xc] sm:$0xf]
        %v1010 = vunpack.c.l.b16 %v1002
        %v1011 = vunpack.c.l.b16 %v1003
        %v1012 = vpack.c.b16 %v1011, %v1010
        %v1017 = vunpack.c.l.b16 %v1004
        %v1018 = vunpack.c.l.b16 %v1005
        %v1019 = vunpack.c.l.b16 %v1006
        %v1020 = vunpack.c.l.b16 %v1007
        %v1021 = vpack.c.b16 %v1018, %v1017
        %v1022 = vpack.c.b16 %v1020, %v1019
        %v1026 = vsel %vm400, %v1012, 0
        %1028 = vmatprep.subr.bf16.mxu0 0
        %1029 = vmatpush1.bf16.msra.mxu0 0
        %1030 = vmatprep.subr.bf16.mxu0 0
        %1031 = vmatpush1.bf16.msra.mxu0 0
        %1032 = vmatprep.subr.bf16.mxu0 0
        %1033 = vmatpush1.bf16.msra.mxu0 0
        %1034 = vmatprep.subr.bf16.mxu0 0
        %1035 = vmatpush1.bf16.msra.mxu0 0
        %1036 = vmatprep.subr.bf16.mxu0 0
        %1037 = vmatpush1.bf16.msra.mxu0 0
        %1038 = vmatprep.subr.bf16.mxu0 0
        %1039 = vmatpush1.bf16.msra.mxu0 0
        %1040 = vmatprep.subr.bf16.mxu0 0
        %1041 = vmatpush1.bf16.msra.mxu0 %v1022
        %1042 = vmatprep.subr.bf16.mxu0 0
        %1043 = vmatpush1.bf16.msra.mxu0 %v1021
        %1044 = vmatprep.subr.bf16.mxu0 0
        %1045 = vmatpush2.bf16.msra.mxu0 0
        %1046 = vmatprep.subr.bf16.mxu0 0
        %1047 = vmatpush2.bf16.msra.mxu0 0
        %1048 = vmatprep.subr.bf16.mxu0 0
        %1049 = vmatpush2.bf16.msra.mxu0 0
        %1050 = vmatprep.subr.bf16.mxu0 0
        %1051 = vmatpush2.bf16.msra.mxu0 0
        %1052 = vmatprep.subr.bf16.mxu0 0
        %1053 = vmatpush2.bf16.msra.mxu0 0
        %1054 = vmatprep.subr.bf16.mxu0 0
        %1055 = vmatpush2.bf16.msra.mxu0 0
        %1056 = vmatprep.subr.bf16.mxu0 0
        %1057 = vmatpush2.bf16.msra.mxu0 0
        %1058 = vmatprep.subr.bf16.mxu0 0
        %1059 = vmatpush2.bf16.msra.mxu0 0
        %1060 = vmatprep.mubr.bf16.mxu0 0
        %1061 = vmatmul.mubr.bf16.gmra.mxu0 %v1026
        %v1062 = vpop.f32.mrf.mxu0
        %v1063 = vadd.f32 0.0, %v1062
        %v1064 = vpop.f32.mrf.mxu0
        %v1065 = vpop.f32.mrf.mxu0
        %v1066 = vadd.f32 0.0, %v1065
        %v1067 = vpop.f32.mrf.mxu0
        %1068 = vdwg.mxu0
        %v1069 = vld [vmem:[%s6] sm:$0x1]
        %v1071 = vlaneseq
        %v1072 = vshrl.u32 %v1071, 7
        %v1073 = vsub.s32 0, %v1072
        %v1074 = vrot.slane %v1069, %v1073
        %v1076 = vadd.f32 %v1063, %v1074
        %v1077 = vadd.f32 %v1066, %v1074
        %1078 = vst.msk [vmem:[%s356] sm:$0xff] %vm400, %v1076
        %1079 = vst.msk [vmem:[%s356 + $0x8] sm:$0xff] %vm400, %v1077
        %s1080 = smul.u32 2, %s23
        %p1081 = scmp.lt.s32.totalorder %s1080, 3
        %s1082 = scalar_select %p1081, %s1080, 3
        %s1083 = scalar_lea.vmem %s7, %s1082
        %s1084 = sand.u32 %s224, 1
        %s1085 = scalar_lea.sflag [#allocation3], %s1084
        %s1086 = sand.u32 %s224, 1
        %s1087 = smul.addr %s1086, 16
        %s1088 = scalar_lea.vmem [#allocation2], %s1087
        // Predicated region
        $region49: #{mist_videoqa_forward.1} parent=47 // pred_check
          %p1089 = pneg %p208
        $region50: #{mist_videoqa_forward.1} parent=47 // pred_check_branch
          %1091 = sbr.rel (%p1089) target = $region52
        $region51: #{mist_videoqa_forward.1} parent=47 // pred_region
          %s1092 = smul.u32 2, %s23
        $region52: #{mist_videoqa_forward.1} parent=47 // pred_fallthru
          _
        // Predicated region
        $region53: #{mist_videoqa_forward.1} parent=47 // pred_check
          %p1093 = pneg %p234
        $region54: #{mist_videoqa_forward.1} parent=47 // pred_check_branch
          %1095 = sbr.rel (%p1093) target = $region56
        $region55: #{mist_videoqa_forward.1} parent=47 // pred_region
          %s1096 = smul.u32 2, %s23
          %s1098 = ssub.s32 256, 256
          %1099 = vsyncadd %s1085, %s1098
          %s1100 = smul.addr %s1096, 128
          %s1101 = scalar_lea.hbm %s8, %s1100
          %s1102 = sshll.u32 %s1088, 4
          %s1103 = int_to_ptr.vmem [resolvable:$true] %s1102
          %1108 = dma.vmem_to_hbm [thread:$0]  %s1103, 256, %s1101, %s1085, 128, 128, 8
        $region56: #{mist_videoqa_forward.1} parent=47 // pred_fallthru
          _
      $region48: #{mist_videoqa_forward.1} parent=5 // pred_fallthru
        _
      %p1109 = scmp.le.s32.totalorder 2, %s18
      // Predicated region
      $region57: #{mist_videoqa_forward.1} parent=5 // pred_check
        %p1110 = pneg %p1109
      $region58: #{mist_videoqa_forward.1} parent=5 // pred_check_branch
        %1112 = sbr.rel (%p1110) target = $region60
      $region59: #{mist_videoqa_forward.1} parent=5 // pred_region
        %s1113 = ssub.s32 %s18, 2
        // Predicated region
        $region61: #{mist_videoqa_forward.1} parent=59 // pred_check
          %p1114 = pneg %p214
        $region62: #{mist_videoqa_forward.1} parent=59 // pred_check_branch
          %1116 = sbr.rel (%p1114) target = $region64
        $region63: #{mist_videoqa_forward.1} parent=59 // pred_region
          %s1117 = smul.u32 2, %s24
          %p1118 = scmp.lt.s32.totalorder %s1117, 3
          %s1119 = scalar_select %p1118, %s1117, 3
          %s1120 = scalar_lea.vmem %s7, %s1119
        $region64: #{mist_videoqa_forward.1} parent=59 // pred_fallthru
          _
        // Predicated region
        $region65: #{mist_videoqa_forward.1} parent=59 // pred_check
          %p1121 = pneg %p240
        $region66: #{mist_videoqa_forward.1} parent=59 // pred_check_branch
          %1123 = sbr.rel (%p1121) target = $region68
        $region67: #{mist_videoqa_forward.1} parent=59 // pred_region
          %s1124 = sand.u32 %s225, 1
          %s1125 = scalar_lea.sflag [#allocation3], %s1124
          %s1126 = sand.u32 %s225, 1
          %s1127 = smul.addr %s1126, 16
          %s1128 = scalar_lea.vmem [#allocation2], %s1127
          %1129 = dma.done %s1125, 256
        $region68: #{mist_videoqa_forward.1} parent=59 // pred_fallthru
          _
      $region60: #{mist_videoqa_forward.1} parent=5 // pred_fallthru
        _
    $region6: #{mist_videoqa_forward.1} parent=1 // loop_footer
      %s22 = sadd.s32 1, %s18
    $region7: #{mist_videoqa_forward.1} parent=1 // loop_footer_branch
      %17 = sbr.rel target = $region3
    $region8: #{mist_videoqa_forward.1} parent=1 // loop_exit
      _
    %1130 = vsyncpa [#allocation3], 1
    %s1131 = scalar_lea.sflag [#allocation3], 1
    %1132 = vsyncpa %s1131, 1

</llo_original>
